<compile_context>
chip_gen: v7x
topology: tpu7x:2x2x1
jax: 0.10.0
libtpu: 0.0.40
codegen_flags: <defaults>
</compile_context>

<pallas_src>
import functools

import jax
import jax.numpy as jnp
from jax import lax
from jax.experimental import pallas as pl
from jax.experimental.pallas import tpu as pltpu


def _vq_kernel(x_ref, w_ref, w2_ref, q_ref, idx_ref, sse_ref, csum_ref, *,
               distance_dtype):
    x = x_ref[0]                          # (D, TN) f32, N on the lane axis
    w = w_ref[...]                        # (K, D) f32 codebook (resident tile)
    w2 = w2_ref[...]                      # (K, 1) f32, precomputed ||w_k||^2

    k = w.shape[0]
    tn = x.shape[1]

    # Nearest-code search.  distances = ||x||^2 + ||w||^2 - 2 w.x ; the
    # ||x||^2 term is constant over codes and dropped from the argmin.
    # The (K, TN) score matmul runs on the MXU, optionally with bf16 operands.
    scores = jnp.dot(w.astype(distance_dtype), x.astype(distance_dtype),
                     preferred_element_type=jnp.float32)            # (K, TN)
    d = w2 - 2.0 * scores                                           # (K, TN)

    iota_k = lax.broadcasted_iota(jnp.int32, (k, tn), 0)
    min_d = jnp.min(d, axis=0, keepdims=True)                       # (1, TN)
    # first-minimal index (matches torch/jnp argmin tie-breaking)
    idx = jnp.min(jnp.where(d <= min_d, iota_k, k), axis=0)         # (TN,) int32

    enc = (iota_k == idx[None, :]).astype(jnp.float32)              # (K, TN)
    # q[d, n] = sum_k w[k, d] * enc[k, n]  -> exact f32 codebook rows.
    q = lax.dot_general(w, enc, (((0,), (0,)), ((), ())),
                        preferred_element_type=jnp.float32)         # (D, TN)

    q_ref[...] = q[None, :, :]
    idx_ref[...] = idx[None, None, :]

    # Per-tile partial statistics (reduced in the wrapper) -> fully parallel grid.
    diff = q - x
    sse_ref[...] = jnp.sum(diff * diff).reshape(1, 1, 1, 1)
    csum_ref[...] = jnp.sum(enc, axis=1).reshape(1, 1, 1, k)


def _pick_tile_n(hw, requested):
    """Largest multiple of 128 that divides hw and is <= requested, else hw."""
    t = (min(requested, hw) // 128) * 128
    while t >= 128:
        if hw % t == 0:
            return t
        t -= 128
    return hw


def vector_quantizer_ema_forward(inputs_nchw, embedding_w, commitment_cost,
                                 *, tile_n=512, distance_dtype=jnp.float32):
    """Eval-mode forward of VectorQuantizerEMA.

    inputs_nchw: (B, C, H, W) float32, C == embedding_dim
    embedding_w: (num_embeddings, embedding_dim) float32
    distance_dtype: operand dtype for the distance matmul (bf16 = v6e/v7x MXU
        fast path; argmin on exact ties may differ from the f32 reference).
    Returns (loss, quantized_nchw, perplexity, encodings).
    """
    b, c, h, w_sp = inputs_nchw.shape
    k, d = embedding_w.shape
    assert c == d
    hw = h * w_sp
    n = b * hw

    # NCHW kept as-is: free view to (B, D, H*W); N goes on the lane axis.
    x = inputs_nchw.reshape(b, d, hw).astype(jnp.float32)
    emb = embedding_w.astype(jnp.float32)
    w2 = jnp.sum(emb * emb, axis=1, keepdims=True)        # (K, 1), hoisted

    tn = _pick_tile_n(hw, tile_n)
    n_tiles = hw // tn
    grid = (b, n_tiles)

    # Explicit VMEM budget: ~2x double-buffered per-step working set, floor at
    # the 32 MiB default, capped at 64 MiB (v7x physical VMEM per TC).
    per_step_bytes = 4 * (2 * d * tn + tn + k * d + 2 * k + 1)
    vmem_limit_bytes = int(min(64 * 1024 * 1024,
                               max(32 * 1024 * 1024, 4 * per_step_bytes)))

    out_shapes = (
        jax.ShapeDtypeStruct((b, d, hw), jnp.float32),        # quantized (NCHW view)
        jax.ShapeDtypeStruct((b, 1, hw), jnp.int32),          # nearest-code indices
        jax.ShapeDtypeStruct((b, n_tiles, 1, 1), jnp.float32),  # partial SSE
        jax.ShapeDtypeStruct((b, n_tiles, 1, k), jnp.float32),  # partial counts
    )

    kernel = functools.partial(_vq_kernel, distance_dtype=distance_dtype)

    q_flat, idx_flat, sse_p, csum_p = pl.pallas_call(
        kernel,
        out_shape=out_shapes,
        grid_spec=pltpu.PrefetchScalarGridSpec(
            num_scalar_prefetch=0,
            grid=grid,
            in_specs=[
                pl.BlockSpec((1, d, tn), lambda i, j: (i, 0, j)),
                # Codebook / codebook norms: constant index_map -> resident.
                # (For large codebooks on v7x, pipeline_mode buffering could be
                # reduced; at these sizes the tile is a few hundred bytes.)
                pl.BlockSpec((k, d), lambda i, j: (0, 0)),
                pl.BlockSpec((k, 1), lambda i, j: (0, 0)),
            ],
            out_specs=[
                pl.BlockSpec((1, d, tn), lambda i, j: (i, 0, j)),
                pl.BlockSpec((1, 1, tn), lambda i, j: (i, 0, j)),
                pl.BlockSpec((1, 1, 1, 1), lambda i, j: (i, j, 0, 0)),
                pl.BlockSpec((1, 1, 1, k), lambda i, j: (i, j, 0, 0)),
            ],
        ),
        compiler_params=pltpu.CompilerParams(
            dimension_semantics=("parallel", "parallel"),
            vmem_limit_bytes=vmem_limit_bytes),
    )(x, emb, w2)

    # Loss / stats (tiny glue math on scalars and K-vectors).
    e_latent_loss = jnp.sum(sse_p) / jnp.float32(n * d)    # F.mse_loss (mean)
    loss = commitment_cost * e_latent_loss

    quantized = q_flat.reshape(b, d, h, w_sp)              # already NCHW
    inputs_f32 = inputs_nchw.astype(jnp.float32)
    # straight-through estimator
    quantized = inputs_f32 + lax.stop_gradient(quantized - inputs_f32)

    counts = jnp.sum(csum_p, axis=(0, 1, 2))               # (K,)
    avg_probs = counts / jnp.float32(n)
    perplexity = jnp.exp(-jnp.sum(avg_probs * jnp.log(avg_probs + 1e-10)))

    # Encodings in the PyTorch (N, K) row order (b-major, then h*W + w),
    # materialized outside the kernel because the module returns them.
    encodings = jax.nn.one_hot(idx_flat.reshape(n), k, dtype=jnp.float32)

    return loss, quantized, perplexity, encodings


def _reference(inputs_nchw, embedding_w, commitment_cost):
    inputs = jnp.transpose(inputs_nchw, (0, 2, 3, 1))
    d = embedding_w.shape[1]
    flat = inputs.reshape(-1, d)
    dist = (jnp.sum(flat ** 2, axis=1, keepdims=True)
            + jnp.sum(embedding_w ** 2, axis=1)
            - 2.0 * flat @ embedding_w.T)
    idx = jnp.argmin(dist, axis=1)
    enc = jax.nn.one_hot(idx, embedding_w.shape[0], dtype=jnp.float32)
    q = (enc @ embedding_w).reshape(inputs.shape)
    e_latent = jnp.mean((q - inputs) ** 2)
    loss = commitment_cost * e_latent
    q = inputs + lax.stop_gradient(q - inputs)
    avg_probs = jnp.mean(enc, axis=0)
    perp = jnp.exp(-jnp.sum(avg_probs * jnp.log(avg_probs + 1e-10)))
    return loss, jnp.transpose(q, (0, 3, 1, 2)), perp, enc


if __name__ == "__main__":
    # Module config (synthetic, deterministic init)
    num_embeddings = 16
    embedding_dim = 4
    commitment_cost = 0.25
    # decay / epsilon only feed the (unimplemented) EMA training-mode update.

    key = jax.random.PRNGKey(0)
    k_x, k_w = jax.random.split(key)
    x = jax.random.normal(k_x, (2, embedding_dim, 16, 16), dtype=jnp.float32)
    emb_w = jax.random.normal(k_w, (num_embeddings, embedding_dim),
                              dtype=jnp.float32)  # Embedding.weight.data.normal_()

    n = 2 * 16 * 16

    # f32 distance path: must match the reference.
    loss, quantized, perplexity, encodings = jax.block_until_ready(
        vector_quantizer_ema_forward(x, emb_w, commitment_cost))

    r_loss, r_q, r_perp, r_enc = _reference(x, emb_w, commitment_cost)
    assert quantized.shape == (2, embedding_dim, 16, 16)
    assert encodings.shape == (n, num_embeddings)
    assert jnp.allclose(loss, r_loss, atol=1e-5)
    assert jnp.allclose(perplexity, r_perp, atol=1e-2)
    # Per-row comparison; tolerate rare argmin flips on numerically-tied
    # distances (kernel uses the mathematically equivalent w2 - 2*w.x form).
    enc_rows_ok = jnp.all(encodings == r_enc, axis=-1)
    q_rows_ok = (jnp.max(jnp.abs(quantized - r_q), axis=1) <= 1e-5).reshape(-1)
    assert float(jnp.mean(jnp.logical_and(enc_rows_ok, q_rows_ok))) >= 0.99

    # bf16 distance-matmul path (v6e/v7x MXU fast path): loss / perplexity must
    # stay close; individual argmin picks may flip on near-ties.
    loss16, q16, perp16, _ = jax.block_until_ready(
        vector_quantizer_ema_forward(x, emb_w, commitment_cost,
                                     distance_dtype=jnp.bfloat16))
    assert q16.shape == quantized.shape
    assert jnp.allclose(loss16, r_loss, atol=1e-3)
    assert jnp.allclose(perp16, r_perp, atol=0.5)

    print("KERNEL_OK")
</pallas_src>

<mosaic_0001>
module attributes {stable_mosaic.version = 11 : i64} {
  func.func @_vq_kernel(%arg0: i32, %arg1: i32, %arg2: memref<1x4x256xf32, #tpu.memory_space<vmem>>, %arg3: memref<16x4xf32, #tpu.memory_space<vmem>>, %arg4: memref<16x1xf32, #tpu.memory_space<vmem>>, %arg5: memref<1x4x256xf32, #tpu.memory_space<vmem>>, %arg6: memref<1x1x256xi32, #tpu.memory_space<vmem>>, %arg7: memref<1x1x1x1xf32, #tpu.memory_space<vmem>>, %arg8: memref<1x1x1x16xf32, #tpu.memory_space<vmem>>) attributes {dimension_semantics = [#tpu.dimension_semantics<parallel>, #tpu.dimension_semantics<parallel>], iteration_bounds = array<i64: 2, 1>, scalar_prefetch = 0 : i64, scratch_operands = 0 : i64, tpu.core_type = #tpu.core_type<tc>, window_params = [{transform_indices = @transform_0, window_bounds = array<i64: 1, 4, 256>}, {pipeline_mode = #tpu.pipeline_mode<synchronous>, transform_indices = @transform_1, window_bounds = array<i64: 16, 4>}, {pipeline_mode = #tpu.pipeline_mode<synchronous>, transform_indices = @transform_2, window_bounds = array<i64: 16, 1>}, {transform_indices = @transform_3, window_bounds = array<i64: 1, 4, 256>}, {transform_indices = @transform_4, window_bounds = array<i64: 1, 1, 256>}, {transform_indices = @transform_5, window_bounds = array<i64: 1, 1, 1, 1>}, {transform_indices = @transform_6, window_bounds = array<i64: 1, 1, 1, 16>}]} {
    %c0 = arith.constant 0 : index
    %c0_0 = arith.constant 0 : index
    %c0_1 = arith.constant 0 : index
    %0 = vector.load %arg2[%c0, %c0_0, %c0_1] : memref<1x4x256xf32, #tpu.memory_space<vmem>>, vector<1x4x256xf32>
    %1 = vector.shape_cast %0 : vector<1x4x256xf32> to vector<4x256xf32>
    %c0_2 = arith.constant 0 : index
    %c0_3 = arith.constant 0 : index
    %2 = vector.load %arg3[%c0_2, %c0_3] : memref<16x4xf32, #tpu.memory_space<vmem>>, vector<16x4xf32>
    %c0_4 = arith.constant 0 : index
    %c0_5 = arith.constant 0 : index
    %3 = vector.load %arg4[%c0_4, %c0_5] : memref<16x1xf32, #tpu.memory_space<vmem>>, vector<16x1xf32>
    %cst = arith.constant dense<0.000000e+00> : vector<16x256xf32>
    %4 = tpu.matmul %2, %1, %cst {dimension_numbers = #tpu.dot_dimension_numbers<[1], [0], [0], [1], [0, 0, 1, 1], [], []>} : vector<16x4xf32>, vector<4x256xf32>, vector<16x256xf32> -> vector<16x256xf32>
    %cst_6 = arith.constant 2.000000e+00 : f32
    %5 = vector.broadcast %cst_6 : f32 to vector<16x256xf32>
    %6 = arith.mulf %5, %4 : vector<16x256xf32>
    %7 = vector.broadcast %3 : vector<16x1xf32> to vector<16x256xf32>
    %8 = arith.subf %7, %6 : vector<16x256xf32>
    %9 = tpu.iota {dimensions = array<i32: 0>} : vector<16x256xi32>
    %cst_7 = arith.constant dense<0x7F800000> : vector<256xf32>
    %10 = vector.multi_reduction <minimumf>, %8, %cst_7 [0] : vector<16x256xf32> to vector<256xf32>
    %11 = vector.shape_cast %10 : vector<256xf32> to vector<1x256xf32>
    %12 = vector.broadcast %11 : vector<1x256xf32> to vector<16x256xf32>
    %13 = arith.cmpf ole, %8, %12 : vector<16x256xf32>
    %c16_i32 = arith.constant 16 : i32
    %14 = vector.broadcast %c16_i32 : i32 to vector<16x256xi32>
    %15 = arith.select %13, %9, %14 : vector<16x256xi1>, vector<16x256xi32>
    %cst_8 = arith.constant dense<2147483647> : vector<256xi32>
    %16 = vector.multi_reduction <minsi>, %15, %cst_8 [0] : vector<16x256xi32> to vector<256xi32>
    %17 = vector.shape_cast %16 : vector<256xi32> to vector<1x256xi32>
    %18 = vector.broadcast %17 : vector<1x256xi32> to vector<16x256xi32>
    %19 = arith.cmpi eq, %9, %18 : vector<16x256xi32>
    %20 = arith.extui %19 : vector<16x256xi1> to vector<16x256xi32>
    %21 = arith.sitofp %20 : vector<16x256xi32> to vector<16x256xf32>
    %cst_9 = arith.constant dense<0.000000e+00> : vector<4x256xf32>
    %22 = tpu.matmul %2, %21, %cst_9 {dimension_numbers = #tpu.dot_dimension_numbers<[0], [0], [1], [1], [0, 1, 1, 1], [], []>} : vector<16x4xf32>, vector<16x256xf32>, vector<4x256xf32> -> vector<4x256xf32>
    %23 = vector.shape_cast %22 : vector<4x256xf32> to vector<1x4x256xf32>
    %c0_10 = arith.constant 0 : index
    %c0_11 = arith.constant 0 : index
    %c0_12 = arith.constant 0 : index
    %24 = vector.load %arg5[%c0_10, %c0_11, %c0_12] : memref<1x4x256xf32, #tpu.memory_space<vmem>>, vector<1x4x256xf32>
    tpu.vector_store %arg5[%c0_10, %c0_11, %c0_12], %23 {strides = array<i32>} : memref<1x4x256xf32, #tpu.memory_space<vmem>>, vector<1x4x256xf32>,
    %25 = vector.shape_cast %16 : vector<256xi32> to vector<1x1x256xi32>
    %c0_13 = arith.constant 0 : index
    %c0_14 = arith.constant 0 : index
    %c0_15 = arith.constant 0 : index
    %26 = vector.load %arg6[%c0_13, %c0_14, %c0_15] : memref<1x1x256xi32, #tpu.memory_space<vmem>>, vector<1x1x256xi32>
    tpu.vector_store %arg6[%c0_13, %c0_14, %c0_15], %25 {strides = array<i32>} : memref<1x1x256xi32, #tpu.memory_space<vmem>>, vector<1x1x256xi32>,
    %27 = arith.subf %22, %1 : vector<4x256xf32>
    %28 = arith.mulf %27, %27 : vector<4x256xf32>
    %29 = vector.shape_cast %28 : vector<4x256xf32> to vector<1x4x256xf32>
    %cst_16 = arith.constant dense<0.000000e+00> : vector<1xf32>
    %30 = vector.multi_reduction <add>, %29, %cst_16 [1, 2] : vector<1x4x256xf32> to vector<1xf32>
    %31 = vector.shape_cast %30 : vector<1xf32> to vector<1x1x1xf32>
    %32 = vector.extract %31[0, 0, 0] : f32 from vector<1x1x1xf32>
    %33 = vector.broadcast %32 : f32 to vector<1x1x1x1xf32>
    %c0_17 = arith.constant 0 : index
    %c0_18 = arith.constant 0 : index
    %c0_19 = arith.constant 0 : index
    %c0_20 = arith.constant 0 : index
    %34 = vector.load %arg7[%c0_17, %c0_18, %c0_19, %c0_20] : memref<1x1x1x1xf32, #tpu.memory_space<vmem>>, vector<1x1x1x1xf32>
    tpu.vector_store %arg7[%c0_17, %c0_18, %c0_19, %c0_20], %33 {strides = array<i32>} : memref<1x1x1x1xf32, #tpu.memory_space<vmem>>, vector<1x1x1x1xf32>,
    %cst_21 = arith.constant dense<0.000000e+00> : vector<16xf32>
    %35 = vector.multi_reduction <add>, %21, %cst_21 [1] : vector<16x256xf32> to vector<16xf32>
    %36 = vector.shape_cast %35 : vector<16xf32> to vector<1x1x1x16xf32>
    %c0_22 = arith.constant 0 : index
    %c0_23 = arith.constant 0 : index
    %c0_24 = arith.constant 0 : index
    %c0_25 = arith.constant 0 : index
    %37 = vector.load %arg8[%c0_22, %c0_23, %c0_24, %c0_25] : memref<1x1x1x16xf32, #tpu.memory_space<vmem>>, vector<1x1x1x16xf32>
    tpu.vector_store %arg8[%c0_22, %c0_23, %c0_24, %c0_25], %36 {strides = array<i32>} : memref<1x1x1x16xf32, #tpu.memory_space<vmem>>, vector<1x1x1x16xf32>,
    return
  }
  func.func @transform_0(%arg0: i32, %arg1: i32) -> (i32, i32, i32) {
    %c0_i32 = arith.constant 0 : i32
    %c0_i32_0 = arith.constant 0 : i32
    return %arg0, %c0_i32, %arg1 : i32, i32, i32
  }
  func.func @transform_1(%arg0: i32, %arg1: i32) -> (i32, i32) {
    %c0_i32 = arith.constant 0 : i32
    %c0_i32_0 = arith.constant 0 : i32
    %c0_i32_1 = arith.constant 0 : i32
    return %c0_i32, %c0_i32_0 : i32, i32
  }
  func.func @transform_2(%arg0: i32, %arg1: i32) -> (i32, i32) {
    %c0_i32 = arith.constant 0 : i32
    %c0_i32_0 = arith.constant 0 : i32
    %c0_i32_1 = arith.constant 0 : i32
    return %c0_i32, %c0_i32_0 : i32, i32
  }
  func.func @transform_3(%arg0: i32, %arg1: i32) -> (i32, i32, i32) {
    %c0_i32 = arith.constant 0 : i32
    %c0_i32_0 = arith.constant 0 : i32
    return %arg0, %c0_i32, %arg1 : i32, i32, i32
  }
  func.func @transform_4(%arg0: i32, %arg1: i32) -> (i32, i32, i32) {
    %c0_i32 = arith.constant 0 : i32
    %c0_i32_0 = arith.constant 0 : i32
    return %arg0, %c0_i32, %arg1 : i32, i32, i32
  }
  func.func @transform_5(%arg0: i32, %arg1: i32) -> (i32, i32, i32, i32) {
    %c0_i32 = arith.constant 0 : i32
    %c0_i32_0 = arith.constant 0 : i32
    %c0_i32_1 = arith.constant 0 : i32
    return %arg0, %arg1, %c0_i32, %c0_i32_0 : i32, i32, i32, i32
  }
  func.func @transform_6(%arg0: i32, %arg1: i32) -> (i32, i32, i32, i32) {
    %c0_i32 = arith.constant 0 : i32
    %c0_i32_0 = arith.constant 0 : i32
    %c0_i32_1 = arith.constant 0 : i32
    return %arg0, %arg1, %c0_i32, %c0_i32_0 : i32, i32, i32, i32
  }
}

</mosaic_0001>

<llo_original>
// kernel: tpu_custom_call.1
$region0: #{tpu_custom_call.1}
  #allocation0 [shape = 'u32[]', space=smem, size = 0x4, offset = 0x4, fixed_abs, tag = 'smem constant byte address 0x4 - core index']
  #allocation1 [shape = 'u32[144,128]{1,0:T(1,128)}', space=vmem, size = 0x12000, scoped, tag = 'internal scratch']
  %s0 = inlined_call_operand.vmem [shape: f32[2,4,256], index: 0, kind: input, shape index: {}]
  %s1 = inlined_call_operand.vmem [shape: f32[16,4], index: 1, kind: input, shape index: {}]
  %s2 = inlined_call_operand.vmem [shape: f32[16,1], index: 2, kind: input, shape index: {}]
  %s3 = inlined_call_operand.hbm [shape: f32[2,4,256], index: 3, kind: output, shape index: {0}]
  %s4 = inlined_call_operand.hbm [shape: s32[2,1,256], index: 4, kind: output, shape index: {1}]
  %s5 = inlined_call_operand.vmem [shape: f32[2,1,1,1], index: 5, kind: output, shape index: {2}]
  %s6 = inlined_call_operand.hbm [shape: f32[2,1,1,16], index: 6, kind: output, shape index: {3}]
  %7 = xla_tuple %s3, %s4, %s5, %s6
  %s8 = sld [smem:[#allocation0]]
  $region69: #{tpu_custom_call.1} parent=0
    _
  %s10 = ssub.s32 1, %s8
  %s11 = scalar_select 0, %s10, %s8
  $region1: #{tpu_custom_call.1} parent=0
    #allocation2 [shape = 'u8[8192]{0}', space=vmem, size = 0x2000, scoped, tag = 'output window, operand 0']
    #allocation3 [shape = 's32[2]{0}', space=sflag, size = 0x8, scoped, tag = 'scoped memory for tpu_custom_call.1']
    #allocation4 [shape = 'u8[2048]{0}', space=vmem, size = 0x800, scoped, tag = 'output window, operand 1']
    #allocation5 [shape = 's32[2]{0}', space=sflag, size = 0x8, scoped, tag = 'scoped memory for tpu_custom_call.1']
    #allocation6 [shape = 'u8[1024]{0}', space=vmem, size = 0x400, scoped, tag = 'output window, operand 3']
    %12 = vsyncpa [#allocation3], 0
    %s13 = scalar_lea.sflag [#allocation3], 1
    %14 = vsyncpa %s13, 0
    %15 = vsyncpa [#allocation5], 0
    %s16 = scalar_lea.sflag [#allocation5], 1
    %17 = vsyncpa %s16, 0
    loop: start=0, step=1, limit=4
    $region2: #{tpu_custom_call.1} parent=1 // loop_pre_header
      _
    $region3: #{tpu_custom_call.1} parent=1 // loop_header
      %s19 = sphi 0, %s23
      %p20 = scmp.ge.s32.totalorder %s19, 4
      %s26 = sphi 0, %s38
      %s27 = sphi 0, %s34
      %s28 = sphi 0, %s26
      %s29 = sphi 0, %s27
      %s30 = sphi 0, %s28
      %s31 = sphi 0, %s29
      %s43 = sphi 0, %s45
      %s46 = sphi 0, %s43
      %s47 = sphi 0, %s46
      %s63 = sphi 0, %s47
      %s67 = sphi 0, %s67
      %s69 = sphi 0, %s67
      %s70 = sphi 0, %s69
      %s84 = sphi 0, %s70
      %s88 = sphi 0, %s88
      %s90 = sphi 0, %s88
      %s91 = sphi 0, %s90
      %s105 = sphi 0, %s91
      %s113 = sphi 0, %s115
      %s116 = sphi 0, %s113
      %s117 = sphi 0, %s116
      %s133 = sphi 0, %s117
      %s141 = sphi 0, %s143
      %s144 = sphi 0, %s141
      %s145 = sphi 0, %s144
      %s161 = sphi 0, %s145
      %s169 = sphi 0, %s171
      %s172 = sphi 0, %s169
      %s173 = sphi 0, %s172
      %s189 = sphi 0, %s173
      %s197 = sphi 0, %s199
      %s200 = sphi 0, %s197
      %s201 = sphi 0, %s200
      %s217 = sphi 0, %s201
    $region4: #{tpu_custom_call.1} parent=1 // loop_header_branch
      %22 = sbr.rel (%p20) target = $region8
    $region5: #{tpu_custom_call.1} parent=1 // loop_body
      %s24 = ssub.s32 %s19, 1
      %s25 = ssub.s32 %s19, 2
      %s32 = sadd.s32 1, %s27
      %p33 = scmp.ge.s32.totalorder %s32, 1
      %s34 = scalar_select %p33, 0, %s32
      %s35 = sadd.s32 1, %s26
      %s36 = scalar_select %p33, %s35, %s26
      %p37 = scmp.ge.s32.totalorder %s36, 2
      %s38 = scalar_select %p37, 0, %s36
      %s39 = ssub.s32 %s26, %s38
      %s40 = ssub.s32 %s27, %s34
      %s41 = sor.u32 %s39, %s40
      %p42 = scmp.eq.s32.totalorder %s41, 0
      %s44 = sadd.s32 %s43, 1
      %s45 = scalar_select %p42, %s43, %s44
      %p48 = pneg %p42
      %p49 = scmp.eq.s32.totalorder %s19, 1
      %p50 = por %p48, %p49
      %p51 = scmp.ne.s32.totalorder %s43, %s46
      %p52 = scmp.eq.s32.totalorder %s19, 0
      %p53 = por %p51, %p52
      %p54 = scmp.ne.s32.totalorder %s43, %s46
      %p55 = scmp.eq.s32.totalorder %s24, 1
      %p56 = por %p54, %p55
      %p57 = scmp.ne.s32.totalorder %s46, %s47
      %p58 = scmp.eq.s32.totalorder %s24, 0
      %p59 = por %p57, %p58
      %p60 = scmp.ne.s32.totalorder %s46, %s47
      %p61 = scmp.eq.s32.totalorder %s25, 1
      %p62 = por %p60, %p61
      %p64 = scmp.ne.s32.totalorder %s47, %s63
      %p65 = scmp.eq.s32.totalorder %s25, 0
      %p66 = por %p64, %p65
      %s68 = sadd.s32 %s67, 1
      %p71 = scmp.eq.s32.totalorder %s19, 1
      %p72 = scmp.ne.s32.totalorder %s67, %s69
      %p73 = scmp.eq.s32.totalorder %s19, 0
      %p74 = por %p72, %p73
      %p75 = scmp.ne.s32.totalorder %s67, %s69
      %p76 = scmp.eq.s32.totalorder %s24, 1
      %p77 = por %p75, %p76
      %p78 = scmp.ne.s32.totalorder %s69, %s70
      %p79 = scmp.eq.s32.totalorder %s24, 0
      %p80 = por %p78, %p79
      %p81 = scmp.ne.s32.totalorder %s69, %s70
      %p82 = scmp.eq.s32.totalorder %s25, 1
      %p83 = por %p81, %p82
      %p85 = scmp.ne.s32.totalorder %s70, %s84
      %p86 = scmp.eq.s32.totalorder %s25, 0
      %p87 = por %p85, %p86
      %s89 = sadd.s32 %s88, 1
      %p92 = scmp.eq.s32.totalorder %s19, 1
      %p93 = scmp.ne.s32.totalorder %s88, %s90
      %p94 = scmp.eq.s32.totalorder %s19, 0
      %p95 = por %p93, %p94
      %p96 = scmp.ne.s32.totalorder %s88, %s90
      %p97 = scmp.eq.s32.totalorder %s24, 1
      %p98 = por %p96, %p97
      %p99 = scmp.ne.s32.totalorder %s90, %s91
      %p100 = scmp.eq.s32.totalorder %s24, 0
      %p101 = por %p99, %p100
      %p102 = scmp.ne.s32.totalorder %s90, %s91
      %p103 = scmp.eq.s32.totalorder %s25, 1
      %p104 = por %p102, %p103
      %p106 = scmp.ne.s32.totalorder %s91, %s105
      %p107 = scmp.eq.s32.totalorder %s25, 0
      %p108 = por %p106, %p107
      %s109 = ssub.s32 %s26, %s38
      %s110 = ssub.s32 %s27, %s34
      %s111 = sor.u32 %s109, %s110
      %p112 = scmp.eq.s32.totalorder %s111, 0
      %s114 = sadd.s32 %s113, 1
      %s115 = scalar_select %p112, %s113, %s114
      %p118 = pneg %p112
      %p119 = scmp.eq.s32.totalorder %s19, 1
      %p120 = por %p118, %p119
      %p121 = scmp.ne.s32.totalorder %s113, %s116
      %p122 = scmp.eq.s32.totalorder %s19, 0
      %p123 = por %p121, %p122
      %p124 = scmp.ne.s32.totalorder %s113, %s116
      %p125 = scmp.eq.s32.totalorder %s24, 1
      %p126 = por %p124, %p125
      %p127 = scmp.ne.s32.totalorder %s116, %s117
      %p128 = scmp.eq.s32.totalorder %s24, 0
      %p129 = por %p127, %p128
      %p130 = scmp.ne.s32.totalorder %s116, %s117
      %p131 = scmp.eq.s32.totalorder %s25, 1
      %p132 = por %p130, %p131
      %p134 = scmp.ne.s32.totalorder %s117, %s133
      %p135 = scmp.eq.s32.totalorder %s25, 0
      %p136 = por %p134, %p135
      %s137 = ssub.s32 %s26, %s38
      %s138 = ssub.s32 %s27, %s34
      %s139 = sor.u32 %s137, %s138
      %p140 = scmp.eq.s32.totalorder %s139, 0
      %s142 = sadd.s32 %s141, 1
      %s143 = scalar_select %p140, %s141, %s142
      %p146 = pneg %p140
      %p147 = scmp.eq.s32.totalorder %s19, 1
      %p148 = por %p146, %p147
      %p149 = scmp.ne.s32.totalorder %s141, %s144
      %p150 = scmp.eq.s32.totalorder %s19, 0
      %p151 = por %p149, %p150
      %p152 = scmp.ne.s32.totalorder %s141, %s144
      %p153 = scmp.eq.s32.totalorder %s24, 1
      %p154 = por %p152, %p153
      %p155 = scmp.ne.s32.totalorder %s144, %s145
      %p156 = scmp.eq.s32.totalorder %s24, 0
      %p157 = por %p155, %p156
      %p158 = scmp.ne.s32.totalorder %s144, %s145
      %p159 = scmp.eq.s32.totalorder %s25, 1
      %p160 = por %p158, %p159
      %p162 = scmp.ne.s32.totalorder %s145, %s161
      %p163 = scmp.eq.s32.totalorder %s25, 0
      %p164 = por %p162, %p163
      %s165 = ssub.s32 %s26, %s38
      %s166 = ssub.s32 %s27, %s34
      %s167 = sor.u32 %s165, %s166
      %p168 = scmp.eq.s32.totalorder %s167, 0
      %s170 = sadd.s32 %s169, 1
      %s171 = scalar_select %p168, %s169, %s170
      %p174 = pneg %p168
      %p175 = scmp.eq.s32.totalorder %s19, 1
      %p176 = por %p174, %p175
      %p177 = scmp.ne.s32.totalorder %s169, %s172
      %p178 = scmp.eq.s32.totalorder %s19, 0
      %p179 = por %p177, %p178
      %p180 = scmp.ne.s32.totalorder %s169, %s172
      %p181 = scmp.eq.s32.totalorder %s24, 1
      %p182 = por %p180, %p181
      %p183 = scmp.ne.s32.totalorder %s172, %s173
      %p184 = scmp.eq.s32.totalorder %s24, 0
      %p185 = por %p183, %p184
      %p186 = scmp.ne.s32.totalorder %s172, %s173
      %p187 = scmp.eq.s32.totalorder %s25, 1
      %p188 = por %p186, %p187
      %p190 = scmp.ne.s32.totalorder %s173, %s189
      %p191 = scmp.eq.s32.totalorder %s25, 0
      %p192 = por %p190, %p191
      %s193 = ssub.s32 %s26, %s38
      %s194 = ssub.s32 %s27, %s34
      %s195 = sor.u32 %s193, %s194
      %p196 = scmp.eq.s32.totalorder %s195, 0
      %s198 = sadd.s32 %s197, 1
      %s199 = scalar_select %p196, %s197, %s198
      %p202 = pneg %p196
      %p203 = scmp.eq.s32.totalorder %s19, 1
      %p204 = por %p202, %p203
      %p205 = scmp.ne.s32.totalorder %s197, %s200
      %p206 = scmp.eq.s32.totalorder %s19, 0
      %p207 = por %p205, %p206
      %p208 = scmp.ne.s32.totalorder %s197, %s200
      %p209 = scmp.eq.s32.totalorder %s24, 1
      %p210 = por %p208, %p209
      %p211 = scmp.ne.s32.totalorder %s200, %s201
      %p212 = scmp.eq.s32.totalorder %s24, 0
      %p213 = por %p211, %p212
      %p214 = scmp.ne.s32.totalorder %s200, %s201
      %p215 = scmp.eq.s32.totalorder %s25, 1
      %p216 = por %p214, %p215
      %p218 = scmp.ne.s32.totalorder %s201, %s217
      %p219 = scmp.eq.s32.totalorder %s25, 0
      %p220 = por %p218, %p219
      %p221 = scmp.le.s32.totalorder 1, %s19
      %p222 = scmp.lt.s32.totalorder %s19, 3
      %p223 = pnand %p221, %p222
      %p224 = pneg %p223
      // Predicated region
      $region9: #{tpu_custom_call.1} parent=5 // pred_check
        _
      $region10: #{tpu_custom_call.1} parent=5 // pred_check_branch
        %226 = sbr.rel (%p223) target = $region12
      $region11: #{tpu_custom_call.1} parent=5 // pred_region
        %s227 = ssub.s32 %s19, 1
        // Predicated region
        $region13: #{tpu_custom_call.1} parent=11 // pred_check
          %p228 = pneg %p80
        $region14: #{tpu_custom_call.1} parent=11 // pred_check_branch
          %230 = sbr.rel (%p228) target = $region16
        $region15: #{tpu_custom_call.1} parent=11 // pred_region
          _
        $region16: #{tpu_custom_call.1} parent=11 // pred_fallthru
          _
        // Predicated region
        $region17: #{tpu_custom_call.1} parent=11 // pred_check
          %p231 = pneg %p101
        $region18: #{tpu_custom_call.1} parent=11 // pred_check_branch
          %233 = sbr.rel (%p231) target = $region20
        $region19: #{tpu_custom_call.1} parent=11 // pred_region
          _
        $region20: #{tpu_custom_call.1} parent=11 // pred_fallthru
          _
      $region12: #{tpu_custom_call.1} parent=5 // pred_fallthru
        _
      %p234 = scmp.lt.s32.totalorder %s19, 2
      // Predicated region
      $region21: #{tpu_custom_call.1} parent=5 // pred_check
        %p235 = pneg %p234
      $region22: #{tpu_custom_call.1} parent=5 // pred_check_branch
        %237 = sbr.rel (%p235) target = $region24
      $region23: #{tpu_custom_call.1} parent=5 // pred_region
        // Predicated region
        $region25: #{tpu_custom_call.1} parent=23 // pred_check
          %p238 = pneg %p53
        $region26: #{tpu_custom_call.1} parent=23 // pred_check_branch
          %240 = sbr.rel (%p238) target = $region28
        $region27: #{tpu_custom_call.1} parent=23 // pred_region
          %s241 = smul.u32 2, %s27
          %p242 = scmp.lt.s32.totalorder %s26, 1
          %s243 = scalar_select %p242, %s26, 1
          %p244 = scmp.lt.s32.totalorder %s241, 1
          %s245 = scalar_select %p244, %s241, 1
          %s246 = smul.addr %s243, 2
          %s247 = sadd.s32 %s245, %s246
          %s248 = smul.addr %s247, 4
          %s249 = scalar_lea.vmem %s0, %s248
          %s250 = smul.u32 2, %s27
        $region28: #{tpu_custom_call.1} parent=23 // pred_fallthru
          _
      $region24: #{tpu_custom_call.1} parent=5 // pred_fallthru
        _
      %p251 = scmp.le.s32.totalorder 1, %s19
      %p252 = scmp.lt.s32.totalorder %s19, 3
      %p253 = pnand %p251, %p252
      %p254 = pneg %p253
      // Predicated region
      $region29: #{tpu_custom_call.1} parent=5 // pred_check
        _
      $region30: #{tpu_custom_call.1} parent=5 // pred_check_branch
        %256 = sbr.rel (%p253) target = $region32
      $region31: #{tpu_custom_call.1} parent=5 // pred_region
        %s257 = ssub.s32 %s19, 1
        %s258 = smul.u32 2, %s29
        %p259 = scmp.lt.s32.totalorder %s28, 1
        %s260 = scalar_select %p259, %s28, 1
        %p261 = scmp.lt.s32.totalorder %s258, 1
        %s262 = scalar_select %p261, %s258, 1
        %s263 = smul.addr %s260, 2
        %s264 = sadd.s32 %s262, %s263
        %s265 = smul.addr %s264, 4
        %s266 = scalar_lea.vmem %s0, %s265
        %p267 = pneg %p59
        %p268 = pneg %p56
        %p269 = pneg %p80
        %p270 = pneg %p77
        %p271 = pneg %p101
        %p272 = pneg %p98
        %p273 = pneg %p129
        %p274 = pneg %p126
        %s275 = sand.u32 %s116, 1
        %s276 = scalar_lea.sflag [#allocation3], %s275
        %s277 = sand.u32 %s116, 1
        %s278 = smul.addr %s277, 8
        %s279 = scalar_lea.vmem [#allocation2], %s278
        %p280 = pneg %p157
        %p281 = pneg %p154
        %s282 = sand.u32 %s24, 1
        %s283 = scalar_lea.sflag [#allocation5], %s282
        %s284 = sand.u32 %s144, 1
        %s285 = smul.addr %s284, 2
        %s286 = scalar_lea.vmem [#allocation4], %s285
        %p287 = pneg %p185
        %p288 = pneg %p182
        %p289 = scmp.lt.s32.totalorder %s28, 1
        %s290 = scalar_select %p289, %s28, 1
        %p291 = scmp.lt.s32.totalorder %s29, 0
        %s292 = scalar_select %p291, %s29, 0
        %s293 = sadd.s32 %s292, %s290
        %s294 = scalar_lea.vmem %s5, %s293
        %p295 = pneg %p213
        %p296 = pneg %p210
        %s297 = sand.u32 %s24, 1
        %s298 = scalar_lea.sflag [#allocation5], %s297
        %s299 = sand.u32 %s200, 1
        %s300 = scalar_lea.vmem [#allocation6], %s299
        %s301 = smul.u32 2, %s29
        %p302 = scmp.lt.s32.totalorder %s28, 1
        %s303 = scalar_select %p302, %s28, 1
        %p304 = scmp.lt.s32.totalorder %s301, 1
        %s305 = scalar_select %p304, %s301, 1
        %s306 = smul.addr %s303, 2
        %s307 = sadd.s32 %s305, %s306
        %s308 = smul.addr %s307, 4
        %s309 = scalar_lea.vmem %s0, %s308
        %s310 = smul.u32 2, %s29
        %s311 = smul.u32 2, %s29
        %s312 = smul.u32 2, %s29
        %p313 = scmp.lt.s32.totalorder %s28, 1
        %s314 = scalar_select %p313, %s28, 1
        %p315 = scmp.lt.s32.totalorder %s29, 0
        %s316 = scalar_select %p315, %s29, 0
        %s317 = sadd.s32 %s316, %s314
        %s318 = scalar_lea.vmem %s5, %s317
        %v319 = vld [vmem:[%s309] sm:$0xff]
        %v320 = vld [vmem:[%s1] sm:$0xff]
        %v321 = vld [vmem:[%s1 + $0x8] sm:$0xff]
        %v322 = vld [vmem:[%s2] sm:$0xff]
        %v323 = vld [vmem:[%s2 + $0x8] sm:$0xff]
        %v325 = vcombine.high %v319, %v319
        %vm326 = vcmask 31744
        %v328 = vsel %vm326, %v320, 0
        %v331 = vsel %vm326, %v321, 0
        %vm333 = vcmask 1043456
        %v334 = vsel %vm333, %v319, 0
        %v336 = vsel %vm333, %v325, 0
        %338 = vmatprep.subr.mxu0 %v336
        %339 = vmatpush1.msra.mxu0 %v334
        %340 = vmatprep.subr.mxu0 0.0
        %341 = vmatpush1.msra.mxu0 0.0
        %342 = vmatprep.subr.mxu0 0.0
        %343 = vmatpush1.msra.mxu0 0.0
        %344 = vmatprep.subr.mxu0 0.0
        %345 = vmatpush1.msra.mxu0 0.0
        %346 = vmatprep.subr.mxu0 0.0
        %347 = vmatpush1.msra.mxu0 0.0
        %348 = vmatprep.subr.mxu0 0.0
        %349 = vmatpush1.msra.mxu0 0.0
        %350 = vmatprep.subr.mxu0 0.0
        %351 = vmatpush1.msra.mxu0 0.0
        %352 = vmatprep.subr.mxu0 0.0
        %353 = vmatpush1.msra.mxu0 0.0
        %354 = vmatprep.subr.mxu0 0.0
        %355 = vmatpush1.msra.mxu0 0.0
        %356 = vmatprep.subr.mxu0 0.0
        %357 = vmatpush1.msra.mxu0 0.0
        %358 = vmatprep.subr.mxu0 0.0
        %359 = vmatpush1.msra.mxu0 0.0
        %360 = vmatprep.subr.mxu0 0.0
        %361 = vmatpush1.msra.mxu0 0.0
        %362 = vmatprep.subr.mxu0 0.0
        %363 = vmatpush1.msra.mxu0 0.0
        %364 = vmatprep.subr.mxu0 0.0
        %365 = vmatpush1.msra.mxu0 0.0
        %366 = vmatprep.subr.mxu0 0.0
        %367 = vmatpush1.msra.mxu0 0.0
        %368 = vmatprep.subr.mxu0 0.0
        %369 = vmatpush1.msra.mxu0 0.0
        %370 = vmatprep.subr.mxu0 0.0
        %371 = vmatpush1.msra.mxu0 0.0
        %372 = vmatprep.subr.mxu0 0.0
        %373 = vmatpush1.msra.mxu0 0.0
        %374 = vmatprep.subr.mxu0 0.0
        %375 = vmatpush1.msra.mxu0 0.0
        %376 = vmatprep.subr.mxu0 0.0
        %377 = vmatpush1.msra.mxu0 0.0
        %378 = vmatprep.subr.mxu0 0.0
        %379 = vmatpush1.msra.mxu0 0.0
        %380 = vmatprep.subr.mxu0 0.0
        %381 = vmatpush1.msra.mxu0 0.0
        %382 = vmatprep.subr.mxu0 0.0
        %383 = vmatpush1.msra.mxu0 0.0
        %384 = vmatprep.subr.mxu0 0.0
        %385 = vmatpush1.msra.mxu0 0.0
        %386 = vmatprep.subr.mxu0 0.0
        %387 = vmatpush1.msra.mxu0 0.0
        %388 = vmatprep.subr.mxu0 0.0
        %389 = vmatpush1.msra.mxu0 0.0
        %390 = vmatprep.subr.mxu0 0.0
        %391 = vmatpush1.msra.mxu0 0.0
        %392 = vmatprep.subr.mxu0 0.0
        %393 = vmatpush1.msra.mxu0 0.0
        %394 = vmatprep.subr.mxu0 0.0
        %395 = vmatpush1.msra.mxu0 0.0
        %396 = vmatprep.subr.mxu0 0.0
        %397 = vmatpush1.msra.mxu0 0.0
        %398 = vmatprep.subr.mxu0 0.0
        %399 = vmatpush1.msra.mxu0 0.0
        %400 = vmatprep.subr.mxu0 0.0
        %401 = vmatpush1.msra.mxu0 0.0
        %402 = vmatprep.mubr.f32.mxu0 0.0
        %403 = vmatmul.mubr.f32.gmra.mrb[0].mxu0 %v328
        %v404 = vpop.f32.mrb[0].mxu0
        %v405 = vadd.f32 0.0, %v404
        %v406 = vpop.f32.mrb[0].mxu0
        %v407 = vadd.f32 0.0, %v406
        %408 = vmatprep.mubr.f32.mxu0 0.0
        %409 = vmatmul.mubr.f32.gmra.mrb[0].mxu0 %v331
        %v410 = vpop.f32.mrb[0].mxu0
        %v411 = vadd.f32 0.0, %v410
        %v412 = vpop.f32.mrb[0].mxu0
        %v413 = vadd.f32 0.0, %v412
        %414 = vdwg.mxu0
        %v415 = vmul.f32 %v405, 2.0
        %v416 = vmul.f32 %v407, 2.0
        %v417 = vmul.f32 %v411, 2.0
        %v418 = vmul.f32 %v413, 2.0
        %420 = vset.pattern.permute.xlu0 0
        %421 = vperm.xlu0 %420, %v322
        %v422 = vpop.permute.xlu0 %421
        %425 = vset.pattern.permute.xlu0 0
        %426 = vperm.xlu0 %425, %v323
        %v427 = vpop.permute.xlu0 %426
        %v429 = vsub.f32 %v422, %v415
        %v430 = vsub.f32 %v422, %v416
        %v431 = vsub.f32 %v427, %v417
        %v432 = vsub.f32 %v427, %v418
        %v433 = vlaneseq
        %v434 = vshrl.u32 %v433, 7
        %v435 = vadd.s32 %v434, 8
        %v436 = vmin.f32 %v429, %v431
        %v437 = vrot.slane %v436, 4
        %v438 = vmin.f32 %v436, %v437
        %v439 = vrot.slane %v438, 2
        %v440 = vmin.f32 %v438, %v439
        %v441 = vrot.slane %v440, 1
        %v442 = vmin.f32 %v440, %v441
        %v443 = vmin.f32 %v430, %v432
        %v444 = vrot.slane %v443, 4
        %v445 = vmin.f32 %v443, %v444
        %v446 = vrot.slane %v445, 2
        %v447 = vmin.f32 %v445, %v446
        %v448 = vrot.slane %v447, 1
        %v449 = vmin.f32 %v447, %v448
        %vm450 = vcmp.le.f32.partialorder %v429, %v442
        %vm451 = vcmp.le.f32.partialorder %v430, %v449
        %vm452 = vcmp.le.f32.partialorder %v431, %v442
        %vm453 = vcmp.le.f32.partialorder %v432, %v449
        %v454 = vsel %vm450, %v434, 16
        %v455 = vsel %vm451, %v434, 16
        %v456 = vsel %vm452, %v435, 16
        %v457 = vsel %vm453, %v435, 16
        %vm458 = vcmp.lt.s32.totalorder %v454, %v456
        %v459 = vsel %vm458, %v454, %v456
        %v460 = vrot.slane %v459, 4
        %vm461 = vcmp.lt.s32.totalorder %v459, %v460
        %v462 = vsel %vm461, %v459, %v460
        %v463 = vrot.slane %v462, 2
        %vm464 = vcmp.lt.s32.totalorder %v462, %v463
        %v465 = vsel %vm464, %v462, %v463
        %v466 = vrot.slane %v465, 1
        %vm467 = vcmp.lt.s32.totalorder %v465, %v466
        %v468 = vsel %vm467, %v465, %v466
        %vm469 = vcmp.lt.s32.totalorder %v455, %v457
        %v470 = vsel %vm469, %v455, %v457
        %v471 = vrot.slane %v470, 4
        %vm472 = vcmp.lt.s32.totalorder %v470, %v471
        %v473 = vsel %vm472, %v470, %v471
        %v474 = vrot.slane %v473, 2
        %vm475 = vcmp.lt.s32.totalorder %v473, %v474
        %v476 = vsel %vm475, %v473, %v474
        %v477 = vrot.slane %v476, 1
        %vm478 = vcmp.lt.s32.totalorder %v476, %v477
        %v479 = vsel %vm478, %v476, %v477
        %vm480 = vcmp.eq.s32.totalorder %v434, %v468
        %vm481 = vcmp.eq.s32.totalorder %v434, %v479
        %vm482 = vcmp.eq.s32.totalorder %v435, %v468
        %vm483 = vcmp.eq.s32.totalorder %v435, %v479
        %v484 = vsel %vm480, 1, 0
        %v485 = vsel %vm481, 1, 0
        %v486 = vsel %vm482, 1, 0
        %v487 = vsel %vm483, 1, 0
        %v488 = vcvt.s32.f32 %v484
        %v489 = vcvt.s32.f32 %v485
        %v490 = vcvt.s32.f32 %v486
        %v491 = vcvt.s32.f32 %v487
        %492 = vxpose.xlu0.b32.start [1/16] %v320, 128
        %493 = vxpose.xlu0.b32.cont [2/16] %v321, 128
        %494 = vxpose.xlu0.b32.cont [3/16] 0.0, 128
        %495 = vxpose.xlu0.b32.cont [4/16] 0.0, 128
        %496 = vxpose.xlu0.b32.cont [5/16] 0.0, 128
        %497 = vxpose.xlu0.b32.cont [6/16] 0.0, 128
        %498 = vxpose.xlu0.b32.cont [7/16] 0.0, 128
        %499 = vxpose.xlu0.b32.cont [8/16] 0.0, 128
        %500 = vxpose.xlu0.b32.cont [9/16] 0.0, 128
        %501 = vxpose.xlu0.b32.cont [10/16] 0.0, 128
        %502 = vxpose.xlu0.b32.cont [11/16] 0.0, 128
        %503 = vxpose.xlu0.b32.cont [12/16] 0.0, 128
        %504 = vxpose.xlu0.b32.cont [13/16] 0.0, 128
        %505 = vxpose.xlu0.b32.cont [14/16] 0.0, 128
        %506 = vxpose.xlu0.b32.cont [15/16] 0.0, 128
        %507 = vxpose.xlu0.b32.end [16/16] 0.0, 128
        %v508 = vpop.trf.xlu0
        %v509 = vpop.trf.xlu0
        %v510 = vpop.trf.xlu0
        %v511 = vpop.trf.xlu0
        %v512 = vpop.trf.xlu0
        %v513 = vpop.trf.xlu0
        %v514 = vpop.trf.xlu0
        %v515 = vpop.trf.xlu0
        %v516 = vpop.trf.xlu0
        %v517 = vpop.trf.xlu0
        %v518 = vpop.trf.xlu0
        %v519 = vpop.trf.xlu0
        %v520 = vpop.trf.xlu0
        %v521 = vpop.trf.xlu0
        %v522 = vpop.trf.xlu0
        %v523 = vpop.trf.xlu0
        %vm524 = vcmask 130048
        %v526 = vsel %vm524, %v508, 0
        %528 = vmatprep.subr.mxu0 %v489
        %529 = vmatpush1.msra.mxu0 %v488
        %530 = vmatprep.subr.mxu0 %v491
        %531 = vmatpush1.msra.mxu0 %v490
        %532 = vmatprep.subr.mxu0 0.0
        %533 = vmatpush1.msra.mxu0 0.0
        %534 = vmatprep.subr.mxu0 0.0
        %535 = vmatpush1.msra.mxu0 0.0
        %536 = vmatprep.subr.mxu0 0.0
        %537 = vmatpush1.msra.mxu0 0.0
        %538 = vmatprep.subr.mxu0 0.0
        %539 = vmatpush1.msra.mxu0 0.0
        %540 = vmatprep.subr.mxu0 0.0
        %541 = vmatpush1.msra.mxu0 0.0
        %542 = vmatprep.subr.mxu0 0.0
        %543 = vmatpush1.msra.mxu0 0.0
        %544 = vmatprep.subr.mxu0 0.0
        %545 = vmatpush1.msra.mxu0 0.0
        %546 = vmatprep.subr.mxu0 0.0
        %547 = vmatpush1.msra.mxu0 0.0
        %548 = vmatprep.subr.mxu0 0.0
        %549 = vmatpush1.msra.mxu0 0.0
        %550 = vmatprep.subr.mxu0 0.0
        %551 = vmatpush1.msra.mxu0 0.0
        %552 = vmatprep.subr.mxu0 0.0
        %553 = vmatpush1.msra.mxu0 0.0
        %554 = vmatprep.subr.mxu0 0.0
        %555 = vmatpush1.msra.mxu0 0.0
        %556 = vmatprep.subr.mxu0 0.0
        %557 = vmatpush1.msra.mxu0 0.0
        %558 = vmatprep.subr.mxu0 0.0
        %559 = vmatpush1.msra.mxu0 0.0
        %560 = vmatprep.subr.mxu0 0.0
        %561 = vmatpush1.msra.mxu0 0.0
        %562 = vmatprep.subr.mxu0 0.0
        %563 = vmatpush1.msra.mxu0 0.0
        %564 = vmatprep.subr.mxu0 0.0
        %565 = vmatpush1.msra.mxu0 0.0
        %566 = vmatprep.subr.mxu0 0.0
        %567 = vmatpush1.msra.mxu0 0.0
        %568 = vmatprep.subr.mxu0 0.0
        %569 = vmatpush1.msra.mxu0 0.0
        %570 = vmatprep.subr.mxu0 0.0
        %571 = vmatpush1.msra.mxu0 0.0
        %572 = vmatprep.subr.mxu0 0.0
        %573 = vmatpush1.msra.mxu0 0.0
        %574 = vmatprep.subr.mxu0 0.0
        %575 = vmatpush1.msra.mxu0 0.0
        %576 = vmatprep.subr.mxu0 0.0
        %577 = vmatpush1.msra.mxu0 0.0
        %578 = vmatprep.subr.mxu0 0.0
        %579 = vmatpush1.msra.mxu0 0.0
        %580 = vmatprep.subr.mxu0 0.0
        %581 = vmatpush1.msra.mxu0 0.0
        %582 = vmatprep.subr.mxu0 0.0
        %583 = vmatpush1.msra.mxu0 0.0
        %584 = vmatprep.subr.mxu0 0.0
        %585 = vmatpush1.msra.mxu0 0.0
        %586 = vmatprep.subr.mxu0 0.0
        %587 = vmatpush1.msra.mxu0 0.0
        %588 = vmatprep.subr.mxu0 0.0
        %589 = vmatpush1.msra.mxu0 0.0
        %590 = vmatprep.subr.mxu0 0.0
        %591 = vmatpush1.msra.mxu0 0.0
        %592 = vmatprep.mubr.f32.mxu0 0.0
        %593 = vmatmul.mubr.f32.gmra.mrb[0].mxu0 %v526
        %v594 = vpop.f32.mrb[0].mxu0
        %v595 = vadd.f32 0.0, %v594
        %v596 = vpop.f32.mrb[0].mxu0
        %v597 = vadd.f32 0.0, %v596
        %598 = vdwg.mxu0
        %v601 = vcombine.low %v595, %v597
        %603 = vst [vmem:[%s279] sm:$0xff] %v601
        %v604 = vcombine.low %v468, %v479
        %v606 = vunpack.c.l.s4 1966171168
        %v607 = vunpack.c.0.s8 %v606
        %v608 = vlaneseq
        %v609 = vshrl.u32 %v608, 7
        %v610 = vsub.s32 %v607, %v609
        %v611 = vrot.slane %v604, %v610
        %v613 = vunpack.c.l.s4 1966171168
        %v614 = vunpack.c.0.s8 %v613
        %v615 = vlaneseq
        %v616 = vshrl.u32 %v615, 7
        %v617 = vsub.s32 %v614, %v616
        %v618 = vrot.slane %v611, %v617
        %v619 = vlaneseq
        %vm620 = vcmp.ge.s32.totalorder %v619, 0
        %vm621 = vcmp.lt.s32.totalorder %v619, 256
        %vm622 = vmand %vm620, %vm621
        %623 = vst.msk [vmem:[%s286] sm:$0x3] %vm622, %v618
        %v625 = vsub.f32 %v595, %v319
        %v626 = vsub.f32 %v597, %v325
        %v627 = vmul.f32 %v625, %v625
        %v628 = vmul.f32 %v626, %v626
        %v629 = vsel %vm333, %v627, 0.0
        %v630 = vsel %vm333, %v628, 0.0
        %v631 = vadd.f32 %v629, %v630
        %632 = vadd.xlane.f32.xlu0 %v631
        %v633 = vpop.xlane.xlu0 %632
        %v634 = vrot.slane %v633, 4
        %v635 = vadd.f32 %v633, %v634
        %v636 = vrot.slane %v635, 2
        %v637 = vadd.f32 %v635, %v636
        %v638 = vrot.slane %v637, 1
        %v639 = vadd.f32 %v637, %v638
        %s640 = vtos %v639
        %v641 = vstv %s640
        %vm642 = vcmask 0
        %643 = vst.msk [vmem:[%s318] sm:$0x1] %vm642, %v641
        %v644 = vadd.f32 %v488, %v489
        %645 = vadd.xlane.f32.xlu0 %v644
        %v646 = vpop.xlane.xlu0 %645
        %v647 = vadd.f32 %v490, %v491
        %648 = vadd.xlane.f32.xlu0 %v647
        %v649 = vpop.xlane.xlu0 %648
        %v652 = vlaneseq
        %v653 = vand.u32 %v652, 127
        %v654 = vlaneseq
        %v655 = vshrl.u32 %v654, 7
        %v656 = vsub.s32 %v653, %v655
        %v657 = vrot.slane %v646, %v656
        %v658 = vadd.s32 %v653, 4294967288
        %v659 = vlaneseq
        %v660 = vshrl.u32 %v659, 7
        %v661 = vsub.s32 %v658, %v660
        %v662 = vrot.slane %v649, %v661
        %vm663 = vcmask 130112
        %v664 = vsel %vm663, %v662, %v657
        %vm666 = vcmask 122880
        %667 = vst.msk [vmem:[%s300] sm:$0x1] %vm666, %v664
        %s668 = sand.u32 %s116, 1
        %s669 = scalar_lea.sflag [#allocation3], %s668
        %s670 = sand.u32 %s116, 1
        %s671 = smul.addr %s670, 8
        %s672 = scalar_lea.vmem [#allocation2], %s671
        %s673 = sand.u32 %s24, 1
        %s674 = scalar_lea.sflag [#allocation5], %s673
        %s675 = sand.u32 %s144, 1
        %s676 = smul.addr %s675, 2
        %s677 = scalar_lea.vmem [#allocation4], %s676
        %p678 = scmp.lt.s32.totalorder %s28, 1
        %s679 = scalar_select %p678, %s28, 1
        %p680 = scmp.lt.s32.totalorder %s29, 0
        %s681 = scalar_select %p680, %s29, 0
        %s682 = sadd.s32 %s681, %s679
        %s683 = scalar_lea.vmem %s5, %s682
        %s684 = sand.u32 %s24, 1
        %s685 = scalar_lea.sflag [#allocation5], %s684
        %s686 = sand.u32 %s200, 1
        %s687 = scalar_lea.vmem [#allocation6], %s686
        // Predicated region
        $region33: #{tpu_custom_call.1} parent=31 // pred_check
          %p688 = pneg %p126
        $region34: #{tpu_custom_call.1} parent=31 // pred_check_branch
          %690 = sbr.rel (%p688) target = $region36
        $region35: #{tpu_custom_call.1} parent=31 // pred_region
          %s691 = smul.u32 2, %s29
          %s693 = ssub.s32 128, 128
          %694 = vsyncadd %s669, %s693
          %s695 = smul.addr %s28, 2
          %s696 = sadd.s32 %s691, %s695
          %s697 = smul.addr %s696, 64
          %s698 = scalar_lea.hbm %s3, %s697
          %s700 = sshll.u32 %s672, 4
          %s701 = int_to_ptr.vmem [resolvable:$true] %s700
          %703 = dma.vmem_to_hbm [thread:$0]  %s701, 128, %s698, %s669
        $region36: #{tpu_custom_call.1} parent=31 // pred_fallthru
          _
        // Predicated region
        $region37: #{tpu_custom_call.1} parent=31 // pred_check
          %p704 = pneg %p154
        $region38: #{tpu_custom_call.1} parent=31 // pred_check_branch
          %706 = sbr.rel (%p704) target = $region40
        $region39: #{tpu_custom_call.1} parent=31 // pred_region
          %s707 = smul.u32 2, %s29
          %s709 = ssub.s32 32, 32
          %710 = vsyncadd %s674, %s709
          %s711 = smul.addr %s28, 2
          %s712 = sadd.s32 %s707, %s711
          %s713 = smul.addr %s712, 16
          %s714 = scalar_lea.hbm %s4, %s713
          %s716 = sshll.u32 %s677, 4
          %s717 = int_to_ptr.vmem [resolvable:$true] %s716
          %719 = dma.vmem_to_hbm [thread:$0]  %s717, 32, %s714, %s674
        $region40: #{tpu_custom_call.1} parent=31 // pred_fallthru
          _
        // Predicated region
        $region41: #{tpu_custom_call.1} parent=31 // pred_check
          %p720 = pneg %p182
        $region42: #{tpu_custom_call.1} parent=31 // pred_check_branch
          %722 = sbr.rel (%p720) target = $region44
        $region43: #{tpu_custom_call.1} parent=31 // pred_region
          _
        $region44: #{tpu_custom_call.1} parent=31 // pred_fallthru
          _
        // Predicated region
        $region45: #{tpu_custom_call.1} parent=31 // pred_check
          %p723 = pneg %p210
        $region46: #{tpu_custom_call.1} parent=31 // pred_check_branch
          %725 = sbr.rel (%p723) target = $region48
        $region47: #{tpu_custom_call.1} parent=31 // pred_region
          %s727 = ssub.s32 16, 16
          %728 = vsyncadd %s685, %s727
          %s729 = sadd.s32 %s29, %s28
          %s730 = smul.addr %s729, 16
          %s731 = scalar_lea.hbm %s6, %s730
          %s733 = sshll.u32 %s687, 4
          %s734 = int_to_ptr.vmem [resolvable:$true] %s733
          %736 = dma.vmem_to_hbm [thread:$0]  %s734, 16, %s731, %s685
        $region48: #{tpu_custom_call.1} parent=31 // pred_fallthru
          _
      $region32: #{tpu_custom_call.1} parent=5 // pred_fallthru
        _
      %p737 = scmp.le.s32.totalorder 2, %s19
      // Predicated region
      $region49: #{tpu_custom_call.1} parent=5 // pred_check
        %p738 = pneg %p737
      $region50: #{tpu_custom_call.1} parent=5 // pred_check_branch
        %740 = sbr.rel (%p738) target = $region52
      $region51: #{tpu_custom_call.1} parent=5 // pred_region
        %s741 = ssub.s32 %s19, 2
        // Predicated region
        $region53: #{tpu_custom_call.1} parent=51 // pred_check
          %p742 = pneg %p132
        $region54: #{tpu_custom_call.1} parent=51 // pred_check_branch
          %744 = sbr.rel (%p742) target = $region56
        $region55: #{tpu_custom_call.1} parent=51 // pred_region
          %s745 = sand.u32 %s117, 1
          %s746 = scalar_lea.sflag [#allocation3], %s745
          %s747 = sand.u32 %s117, 1
          %s748 = smul.addr %s747, 8
          %s749 = scalar_lea.vmem [#allocation2], %s748
          %750 = dma.done %s746, 128
        $region56: #{tpu_custom_call.1} parent=51 // pred_fallthru
          _
        // Predicated region
        $region57: #{tpu_custom_call.1} parent=51 // pred_check
          %p751 = pneg %p160
        $region58: #{tpu_custom_call.1} parent=51 // pred_check_branch
          %753 = sbr.rel (%p751) target = $region60
        $region59: #{tpu_custom_call.1} parent=51 // pred_region
          %s754 = sand.u32 %s25, 1
          %s755 = scalar_lea.sflag [#allocation5], %s754
          %s756 = sand.u32 %s145, 1
          %s757 = smul.addr %s756, 2
          %s758 = scalar_lea.vmem [#allocation4], %s757
          %759 = dma.done %s755, 32
        $region60: #{tpu_custom_call.1} parent=51 // pred_fallthru
          _
        // Predicated region
        $region61: #{tpu_custom_call.1} parent=51 // pred_check
          %p760 = pneg %p188
        $region62: #{tpu_custom_call.1} parent=51 // pred_check_branch
          %762 = sbr.rel (%p760) target = $region64
        $region63: #{tpu_custom_call.1} parent=51 // pred_region
          %p763 = scmp.lt.s32.totalorder %s30, 1
          %s764 = scalar_select %p763, %s30, 1
          %p765 = scmp.lt.s32.totalorder %s31, 0
          %s766 = scalar_select %p765, %s31, 0
          %s767 = sadd.s32 %s766, %s764
          %s768 = scalar_lea.vmem %s5, %s767
        $region64: #{tpu_custom_call.1} parent=51 // pred_fallthru
          _
        // Predicated region
        $region65: #{tpu_custom_call.1} parent=51 // pred_check
          %p769 = pneg %p216
        $region66: #{tpu_custom_call.1} parent=51 // pred_check_branch
          %771 = sbr.rel (%p769) target = $region68
        $region67: #{tpu_custom_call.1} parent=51 // pred_region
          %s772 = sand.u32 %s25, 1
          %s773 = scalar_lea.sflag [#allocation5], %s772
          %s774 = sand.u32 %s201, 1
          %s775 = scalar_lea.vmem [#allocation6], %s774
          %776 = dma.done %s773, 16
        $region68: #{tpu_custom_call.1} parent=51 // pred_fallthru
          _
      $region52: #{tpu_custom_call.1} parent=5 // pred_fallthru
        _
    $region6: #{tpu_custom_call.1} parent=1 // loop_footer
      %s23 = sadd.s32 1, %s19
    $region7: #{tpu_custom_call.1} parent=1 // loop_footer_branch
      %18 = sbr.rel target = $region3
    $region8: #{tpu_custom_call.1} parent=1 // loop_exit
      _
    %777 = vsyncpa [#allocation3], 1
    %s778 = scalar_lea.sflag [#allocation3], 1
    %779 = vsyncpa %s778, 1
    %780 = vsyncpa [#allocation5], 1
    %s781 = scalar_lea.sflag [#allocation5], 1
    %782 = vsyncpa %s781, 1

</llo_original>
